<compile_context>
chip_gen: v5e
topology: v5e:2x2
jax: 0.10.0
libtpu: 0.0.40
codegen_flags: <defaults>
</compile_context>

<pallas_src>
import jax
import jax.numpy as jnp
from jax.experimental import pallas as pl
from jax.experimental.pallas import tpu as pltpu


def bilinear_kernel(uid_ref, iid_ref, ut_ref, it_ref, out_ref):
    # uid_ref/iid_ref: (1, TB) int32 lane-dense id blocks
    # ut_ref: (D+2, num_users) f32   (augmented, pre-transposed user table)
    # it_ref: (D+2, num_items) f32   (augmented, pre-transposed item table)
    # out_ref: (1, TB) f32
    tb = uid_ref.shape[-1]
    num_users = ut_ref.shape[-1]
    num_items = it_ref.shape[-1]
    d_aug = ut_ref.shape[0]

    uid = uid_ref[...]                      # (1, TB)
    iid = iid_ref[...]                      # (1, TB)

    # One-hot gather masks built on the VPU (no cross-lane traffic, no loop).
    u_hot = (jax.lax.broadcasted_iota(jnp.int32, (num_users, tb), 0) == uid
             ).astype(ut_ref.dtype)         # (num_users, TB)
    i_hot = (jax.lax.broadcasted_iota(jnp.int32, (num_items, tb), 0) == iid
             ).astype(it_ref.dtype)         # (num_items, TB)

    # Row gathers as standard-orientation MXU matmuls -> (D+2, TB) slabs.
    g_u = jnp.dot(ut_ref[...], u_hot, preferred_element_type=jnp.float32)
    g_i = jnp.dot(it_ref[...], i_hot, preferred_element_type=jnp.float32)

    prod = g_u * g_i                        # (D+2, TB), VPU elementwise

    # Reduce over the augmented feature dim with (1, D+2) @ (D+2, TB):
    # standard orientation (no transpose), result is the lane-dense (1, TB)
    # output row = dot + user_bias + item_bias.
    out_ref[...] = jnp.dot(jnp.ones((1, d_aug), jnp.float32), prod,
                           preferred_element_type=jnp.float32)


def bilinear_forward(user_ids, item_ids, user_emb, item_emb, user_bias, item_bias,
                     *, tb=None):
    """Pallas implementation of BilinearNet.forward. Returns shape (B,) float32."""
    B = user_ids.shape[0]
    num_users, D = user_emb.shape
    num_items = item_emb.shape[0]
    d_aug = D + 2

    # TB: multiple of 256 (MXU N-dim geometry on v6e/v7x), capped at 2048.
    if tb is None:
        tb = int(min(2048, 256 * pl.cdiv(B, 256)))
    n_tiles = int(pl.cdiv(B, tb))
    pad = n_tiles * tb - B

    uid = jnp.pad(user_ids.astype(jnp.int32), (0, pad)).reshape(n_tiles, tb)
    iid = jnp.pad(item_ids.astype(jnp.int32), (0, pad)).reshape(n_tiles, tb)

    f32 = jnp.float32
    # Fold biases into the tables: last two columns are [bias, 1] / [1, bias].
    u_aug = jnp.concatenate(
        [user_emb.astype(f32), user_bias.reshape(num_users, 1).astype(f32),
         jnp.ones((num_users, 1), f32)], axis=1)            # (num_users, D+2)
    i_aug = jnp.concatenate(
        [item_emb.astype(f32), jnp.ones((num_items, 1), f32),
         item_bias.reshape(num_items, 1).astype(f32)], axis=1)  # (num_items, D+2)
    ut = u_aug.T                                             # (D+2, num_users)
    it = i_aug.T                                             # (D+2, num_items)

    # --- VMEM budget gate (v7x: 64 MiB physical; v5e/v6e: 128 MiB) ---
    itemsize = 4
    est_bytes = (2 * (num_users + num_items) * d_aug        # tables (x2 pipelining bufs)
                 + (num_users + num_items) * tb             # one-hot masks
                 + 3 * d_aug * tb                           # gathered slabs + product
                 + 6 * tb) * itemsize                       # id blocks + output
    vmem_limit = 32 * 1024 * 1024                           # safe on every generation
    try:
        vmem_limit = int(min(vmem_limit,
                             pltpu.get_tpu_info().vmem_capacity_bytes // 2))
    except Exception:
        pass
    if est_bytes > vmem_limit:
        # TODO(synk): P4 fallback (tables in pl.ANY + double-buffered
        # make_async_copy row gathers) for tables too large to be VMEM-resident.
        raise NotImplementedError(
            "embedding tables too large for the VMEM-resident fast path")

    out = pl.pallas_call(
        bilinear_kernel,
        out_shape=jax.ShapeDtypeStruct((n_tiles, tb), jnp.float32),
        grid_spec=pltpu.PrefetchScalarGridSpec(
            num_scalar_prefetch=0,
            grid=(n_tiles,),
            in_specs=[
                pl.BlockSpec((1, tb), lambda i: (i, 0)),               # user ids
                pl.BlockSpec((1, tb), lambda i: (i, 0)),               # item ids
                pl.BlockSpec((d_aug, num_users), lambda i: (0, 0)),    # U'^T resident
                pl.BlockSpec((d_aug, num_items), lambda i: (0, 0)),    # I'^T resident
            ],
            out_specs=pl.BlockSpec((1, tb), lambda i: (i, 0)),
        ),
        compiler_params=pltpu.CompilerParams(
            dimension_semantics=("arbitrary",),   # trivial per-tile work; avoid
                                                  # duplicating tables per-core on v7x
            vmem_limit_bytes=vmem_limit,
        ),
    )(uid, iid, ut, it)

    return out.reshape(-1)[:B]


def init_params(key, num_users, num_items, embedding_dim):
    """Deterministic init matching ScaledEmbedding / ZeroEmbedding."""
    k_u, k_i = jax.random.split(key)
    scale = 1.0 / embedding_dim
    user_emb = jax.random.normal(k_u, (num_users, embedding_dim), jnp.float32) * scale
    item_emb = jax.random.normal(k_i, (num_items, embedding_dim), jnp.float32) * scale
    user_bias = jnp.zeros((num_users, 1), jnp.float32)   # ZeroEmbedding
    item_bias = jnp.zeros((num_items, 1), jnp.float32)   # ZeroEmbedding
    return user_emb, item_emb, user_bias, item_bias


def _reference(user_ids, item_ids, user_emb, item_emb, user_bias, item_bias):
    ue = user_emb[user_ids]
    ie = item_emb[item_ids]
    return (ue * ie).sum(axis=1) + user_bias[user_ids, 0] + item_bias[item_ids, 0]


if __name__ == "__main__":
    num_users = 64
    num_items = 128
    embedding_dim = 32
    batch = 300          # exercises padding (auto TB) and multi-tile (TB=256)

    key = jax.random.PRNGKey(0)
    k_params, k_uid, k_iid, k_ub, k_ib = jax.random.split(key, 5)

    user_emb, item_emb, user_bias, item_bias = init_params(
        k_params, num_users, num_items, embedding_dim
    )

    user_ids = jax.random.randint(k_uid, (batch,), 0, num_users, dtype=jnp.int32)
    item_ids = jax.random.randint(k_iid, (batch,), 0, num_items, dtype=jnp.int32)

    # 1) Module-faithful params (zero biases), auto TB (single padded tile).
    out = bilinear_forward(user_ids, item_ids, user_emb, item_emb, user_bias, item_bias)
    out = jax.block_until_ready(out)
    ref = _reference(user_ids, item_ids, user_emb, item_emb, user_bias, item_bias)
    assert out.shape == (batch,)
    assert jnp.allclose(out, ref, atol=1e-5, rtol=1e-4), (out, ref)

    # 2) Random biases + TB=256 to verify the folded-bias path and the
    #    multi-tile grid with a padded tail tile.
    ub2 = 0.1 * jax.random.normal(k_ub, (num_users, 1), jnp.float32)
    ib2 = 0.1 * jax.random.normal(k_ib, (num_items, 1), jnp.float32)
    out2 = bilinear_forward(user_ids, item_ids, user_emb, item_emb, ub2, ib2, tb=256)
    out2 = jax.block_until_ready(out2)
    ref2 = _reference(user_ids, item_ids, user_emb, item_emb, ub2, ib2)
    assert jnp.allclose(out2, ref2, atol=1e-5, rtol=1e-4), (out2, ref2)

    print("KERNEL_OK")
</pallas_src>

<mosaic_0001>
module attributes {stable_mosaic.version = 11 : i64} {
  func.func @bilinear_kernel(%arg0: i32, %arg1: memref<1x512xi32, #tpu.memory_space<vmem>>, %arg2: memref<1x512xi32, #tpu.memory_space<vmem>>, %arg3: memref<34x64xf32, #tpu.memory_space<vmem>>, %arg4: memref<34x128xf32, #tpu.memory_space<vmem>>, %arg5: memref<1x512xf32, #tpu.memory_space<vmem>>) attributes {dimension_semantics = [#tpu.dimension_semantics<arbitrary>], iteration_bounds = array<i64: 1>, scalar_prefetch = 0 : i64, scratch_operands = 0 : i64, tpu.core_type = #tpu.core_type<tc>, window_params = [{transform_indices = @transform_0, window_bounds = array<i64: 1, 512>}, {transform_indices = @transform_1, window_bounds = array<i64: 1, 512>}, {pipeline_mode = #tpu.pipeline_mode<synchronous>, transform_indices = @transform_2, window_bounds = array<i64: 34, 64>}, {pipeline_mode = #tpu.pipeline_mode<synchronous>, transform_indices = @transform_3, window_bounds = array<i64: 34, 128>}, {transform_indices = @transform_4, window_bounds = array<i64: 1, 512>}]} {
    %c0 = arith.constant 0 : index
    %c0_0 = arith.constant 0 : index
    %0 = vector.load %arg1[%c0, %c0_0] : memref<1x512xi32, #tpu.memory_space<vmem>>, vector<1x512xi32>
    %c0_1 = arith.constant 0 : index
    %c0_2 = arith.constant 0 : index
    %1 = vector.load %arg2[%c0_1, %c0_2] : memref<1x512xi32, #tpu.memory_space<vmem>>, vector<1x512xi32>
    %2 = tpu.iota {dimensions = array<i32: 0>} : vector<64x512xi32>
    %3 = vector.broadcast %0 : vector<1x512xi32> to vector<64x512xi32>
    %4 = arith.cmpi eq, %2, %3 : vector<64x512xi32>
    %5 = arith.extui %4 : vector<64x512xi1> to vector<64x512xi32>
    %6 = arith.sitofp %5 : vector<64x512xi32> to vector<64x512xf32>
    %7 = tpu.iota {dimensions = array<i32: 0>} : vector<128x512xi32>
    %8 = vector.broadcast %1 : vector<1x512xi32> to vector<128x512xi32>
    %9 = arith.cmpi eq, %7, %8 : vector<128x512xi32>
    %10 = arith.extui %9 : vector<128x512xi1> to vector<128x512xi32>
    %11 = arith.sitofp %10 : vector<128x512xi32> to vector<128x512xf32>
    %c0_3 = arith.constant 0 : index
    %c0_4 = arith.constant 0 : index
    %12 = vector.load %arg3[%c0_3, %c0_4] : memref<34x64xf32, #tpu.memory_space<vmem>>, vector<34x64xf32>
    %cst = arith.constant dense<0.000000e+00> : vector<34x512xf32>
    %13 = tpu.matmul %12, %6, %cst {dimension_numbers = #tpu.dot_dimension_numbers<[1], [0], [0], [1], [0, 0, 1, 1], [], []>} : vector<34x64xf32>, vector<64x512xf32>, vector<34x512xf32> -> vector<34x512xf32>
    %c0_5 = arith.constant 0 : index
    %c0_6 = arith.constant 0 : index
    %14 = vector.load %arg4[%c0_5, %c0_6] : memref<34x128xf32, #tpu.memory_space<vmem>>, vector<34x128xf32>
    %cst_7 = arith.constant dense<0.000000e+00> : vector<34x512xf32>
    %15 = tpu.matmul %14, %11, %cst_7 {dimension_numbers = #tpu.dot_dimension_numbers<[1], [0], [0], [1], [0, 0, 1, 1], [], []>} : vector<34x128xf32>, vector<128x512xf32>, vector<34x512xf32> -> vector<34x512xf32>
    %16 = arith.mulf %13, %15 : vector<34x512xf32>
    %cst_8 = arith.constant 1.000000e+00 : f32
    %17 = vector.broadcast %cst_8 : f32 to vector<1x34xf32>
    %cst_9 = arith.constant dense<0.000000e+00> : vector<1x512xf32>
    %18 = tpu.matmul %17, %16, %cst_9 {dimension_numbers = #tpu.dot_dimension_numbers<[1], [0], [0], [1], [0, 0, 1, 1], [], []>} : vector<1x34xf32>, vector<34x512xf32>, vector<1x512xf32> -> vector<1x512xf32>
    %c0_10 = arith.constant 0 : index
    %c0_11 = arith.constant 0 : index
    %19 = vector.load %arg5[%c0_10, %c0_11] : memref<1x512xf32, #tpu.memory_space<vmem>>, vector<1x512xf32>
    tpu.vector_store %arg5[%c0_10, %c0_11], %18 {strides = array<i32>} : memref<1x512xf32, #tpu.memory_space<vmem>>, vector<1x512xf32>,
    return
  }
  func.func @transform_0(%arg0: i32) -> (i32, i32) {
    %c0_i32 = arith.constant 0 : i32
    %c0_i32_0 = arith.constant 0 : i32
    return %arg0, %c0_i32 : i32, i32
  }
  func.func @transform_1(%arg0: i32) -> (i32, i32) {
    %c0_i32 = arith.constant 0 : i32
    %c0_i32_0 = arith.constant 0 : i32
    return %arg0, %c0_i32 : i32, i32
  }
  func.func @transform_2(%arg0: i32) -> (i32, i32) {
    %c0_i32 = arith.constant 0 : i32
    %c0_i32_0 = arith.constant 0 : i32
    %c0_i32_1 = arith.constant 0 : i32
    return %c0_i32, %c0_i32_0 : i32, i32
  }
  func.func @transform_3(%arg0: i32) -> (i32, i32) {
    %c0_i32 = arith.constant 0 : i32
    %c0_i32_0 = arith.constant 0 : i32
    %c0_i32_1 = arith.constant 0 : i32
    return %c0_i32, %c0_i32_0 : i32, i32
  }
  func.func @transform_4(%arg0: i32) -> (i32, i32) {
    %c0_i32 = arith.constant 0 : i32
    %c0_i32_0 = arith.constant 0 : i32
    return %arg0, %c0_i32 : i32, i32
  }
}

</mosaic_0001>

<llo_original>
// kernel: tpu_custom_call.1
$region0: #{tpu_custom_call.1}
  #allocation0 [shape = 'u32[]', space=smem, size = 0x4, offset = 0x4, fixed_abs, tag = 'smem constant byte address 0x4 - core index']
  #allocation1 [shape = 'u32[72,128]{1,0:T(1,128)}', space=vmem, size = 0x9000, scoped, tag = 'internal scratch']
  %s0 = inlined_call_operand.hbm [shape: s32[1,512], index: 0, kind: input, shape index: {}]
  %s1 = inlined_call_operand.hbm [shape: s32[1,512], index: 1, kind: input, shape index: {}]
  %s2 = inlined_call_operand.hbm [shape: f32[34,64], index: 2, kind: input, shape index: {}]
  %s3 = inlined_call_operand.hbm [shape: f32[34,128], index: 3, kind: input, shape index: {}]
  %s4 = inlined_call_operand.hbm [shape: f32[1,512], index: 4, kind: output, shape index: {}]
  %s5 = sld [smem:[#allocation0]]
  $region42: #{tpu_custom_call.1} parent=0
    _
  %s7 = ssub.s32 1, %s5
  %s8 = scalar_select 0, %s7, %s5
  $region1: #{tpu_custom_call.1} parent=0
    #allocation2 [shape = 'u8[2048]{0}', space=vmem, size = 0x800, scoped, tag = 'input window, operand 0, single buffered']
    #allocation3 [shape = 's32[1]{0}', space=sflag, size = 0x4, scoped, tag = 'scoped memory for tpu_custom_call.1']
    #allocation4 [shape = 's32[1]{0}', space=sflag, size = 0x4, scoped, tag = 'scoped memory for tpu_custom_call.1']
    #allocation5 [shape = 'u8[2048]{0}', space=vmem, size = 0x800, scoped, tag = 'input window, operand 1, single buffered']
    #allocation6 [shape = 's32[1]{0}', space=sflag, size = 0x4, scoped, tag = 'scoped memory for tpu_custom_call.1']
    #allocation7 [shape = 'u8[20480]{0}', space=vmem, size = 0x5000, scoped, tag = 'input window, operand 2, single buffered']
    #allocation8 [shape = 'u8[20480]{0}', space=vmem, size = 0x5000, scoped, tag = 'input window, operand 3, single buffered']
    #allocation9 [shape = 's32[1]{0}', space=sflag, size = 0x4, scoped, tag = 'scoped memory for tpu_custom_call.1']
    #allocation10 [shape = 'u8[2048]{0}', space=vmem, size = 0x800, scoped, tag = 'output window, operand 0, single buffered']
    %9 = vsyncpa [#allocation3], 0
    %10 = vsyncpa [#allocation6], 0
    %11 = vsyncpa [#allocation9], 0
    %12 = vsyncpa [#allocation4], 0
    // Predicated region
    $region2: #{tpu_custom_call.1} parent=1 // pred_check
      _
    $region3: #{tpu_custom_call.1} parent=1 // pred_check_branch
      %14 = sbr.rel (0) target = $region5
    $region4: #{tpu_custom_call.1} parent=1 // pred_region
      %16 = vsyncadd [#allocation3], 0
      %s18 = sshll.u32 %s0, 4
      %s19 = int_to_ptr.hbm [resolvable:$true] %s18
      %s20 = sshll.u32 [#allocation2], 4
      %s21 = int_to_ptr.vmem [resolvable:$true] %s20
      %23 = dma.hbm_to_vmem [thread:$0]  %s19, 64, %s21, [#allocation3]
    $region5: #{tpu_custom_call.1} parent=1 // pred_fallthru
      _
    // Predicated region
    $region6: #{tpu_custom_call.1} parent=1 // pred_check
      _
    $region7: #{tpu_custom_call.1} parent=1 // pred_check_branch
      %25 = sbr.rel (0) target = $region9
    $region8: #{tpu_custom_call.1} parent=1 // pred_region
      %27 = vsyncadd [#allocation6], 0
      %s29 = sshll.u32 %s1, 4
      %s30 = int_to_ptr.hbm [resolvable:$true] %s29
      %s31 = sshll.u32 [#allocation5], 4
      %s32 = int_to_ptr.vmem [resolvable:$true] %s31
      %34 = dma.hbm_to_vmem [thread:$0]  %s30, 64, %s32, [#allocation6]
    $region9: #{tpu_custom_call.1} parent=1 // pred_fallthru
      _
    // Predicated region
    $region10: #{tpu_custom_call.1} parent=1 // pred_check
      _
    $region11: #{tpu_custom_call.1} parent=1 // pred_check_branch
      %36 = sbr.rel (0) target = $region13
    $region12: #{tpu_custom_call.1} parent=1 // pred_region
      %38 = vsyncadd [#allocation6], 0
      %s39 = sshll.u32 %s2, 4
      %s40 = int_to_ptr.hbm [resolvable:$true] %s39
      %s41 = sshll.u32 [#allocation7], 4
      %s42 = int_to_ptr.vmem [resolvable:$true] %s41
      %47 = dma.hbm_to_vmem [thread:$0]  %s40, 640, %s42, [#allocation6], 128, 128, 8
    $region13: #{tpu_custom_call.1} parent=1 // pred_fallthru
      _
    // Predicated region
    $region14: #{tpu_custom_call.1} parent=1 // pred_check
      _
    $region15: #{tpu_custom_call.1} parent=1 // pred_check_branch
      %49 = sbr.rel (0) target = $region17
    $region16: #{tpu_custom_call.1} parent=1 // pred_region
      %51 = vsyncadd [#allocation9], 0
      %s52 = sshll.u32 %s3, 4
      %s53 = int_to_ptr.hbm [resolvable:$true] %s52
      %s54 = sshll.u32 [#allocation8], 4
      %s55 = int_to_ptr.vmem [resolvable:$true] %s54
      %60 = dma.hbm_to_vmem [thread:$0]  %s53, 640, %s55, [#allocation9], 128, 128, 8
    $region17: #{tpu_custom_call.1} parent=1 // pred_fallthru
      _
    // Predicated region
    $region18: #{tpu_custom_call.1} parent=1 // pred_check
      _
    $region19: #{tpu_custom_call.1} parent=1 // pred_check_branch
      %62 = sbr.rel (0) target = $region21
    $region20: #{tpu_custom_call.1} parent=1 // pred_region
      %64 = dma.done [#allocation3], 64
    $region21: #{tpu_custom_call.1} parent=1 // pred_fallthru
      _
    // Predicated region
    $region22: #{tpu_custom_call.1} parent=1 // pred_check
      _
    $region23: #{tpu_custom_call.1} parent=1 // pred_check_branch
      %66 = sbr.rel (0) target = $region25
    $region24: #{tpu_custom_call.1} parent=1 // pred_region
      %68 = dma.done [#allocation6], 64
    $region25: #{tpu_custom_call.1} parent=1 // pred_fallthru
      _
    // Predicated region
    $region26: #{tpu_custom_call.1} parent=1 // pred_check
      _
    $region27: #{tpu_custom_call.1} parent=1 // pred_check_branch
      %70 = sbr.rel (0) target = $region29
    $region28: #{tpu_custom_call.1} parent=1 // pred_region
      %72 = dma.done [#allocation6], 640
    $region29: #{tpu_custom_call.1} parent=1 // pred_fallthru
      _
    // Predicated region
    $region30: #{tpu_custom_call.1} parent=1 // pred_check
      _
    $region31: #{tpu_custom_call.1} parent=1 // pred_check_branch
      %74 = sbr.rel (0) target = $region33
    $region32: #{tpu_custom_call.1} parent=1 // pred_region
      %76 = dma.done [#allocation9], 640
    $region33: #{tpu_custom_call.1} parent=1 // pred_fallthru
      _
    %v77 = vld [vmem:[#allocation2] sm:$0xf]
    %v78 = vld [vmem:[#allocation5] sm:$0xf]
    %v79 = vlaneseq
    %v80 = vshrl.u32 %v79, 7
    %v81 = vadd.s32 %v80, 8
    %v82 = vadd.s32 %v80, 16
    %v83 = vadd.s32 %v80, 24
    %v84 = vadd.s32 %v80, 32
    %v85 = vadd.s32 %v80, 40
    %v86 = vadd.s32 %v80, 48
    %v87 = vadd.s32 %v80, 56
    %v88 = vperm.slane %v77, 0
    %v89 = vperm.slane %v77, 1
    %v90 = vperm.slane %v77, 2
    %v91 = vperm.slane %v77, 3
    %vm92 = vcmp.eq.s32.totalorder %v80, %v88
    %vm93 = vcmp.eq.s32.totalorder %v80, %v89
    %vm94 = vcmp.eq.s32.totalorder %v80, %v90
    %vm95 = vcmp.eq.s32.totalorder %v80, %v91
    %vm96 = vcmp.eq.s32.totalorder %v81, %v88
    %vm97 = vcmp.eq.s32.totalorder %v81, %v89
    %vm98 = vcmp.eq.s32.totalorder %v81, %v90
    %vm99 = vcmp.eq.s32.totalorder %v81, %v91
    %vm100 = vcmp.eq.s32.totalorder %v82, %v88
    %vm101 = vcmp.eq.s32.totalorder %v82, %v89
    %vm102 = vcmp.eq.s32.totalorder %v82, %v90
    %vm103 = vcmp.eq.s32.totalorder %v82, %v91
    %vm104 = vcmp.eq.s32.totalorder %v83, %v88
    %vm105 = vcmp.eq.s32.totalorder %v83, %v89
    %vm106 = vcmp.eq.s32.totalorder %v83, %v90
    %vm107 = vcmp.eq.s32.totalorder %v83, %v91
    %vm108 = vcmp.eq.s32.totalorder %v84, %v88
    %vm109 = vcmp.eq.s32.totalorder %v84, %v89
    %vm110 = vcmp.eq.s32.totalorder %v84, %v90
    %vm111 = vcmp.eq.s32.totalorder %v84, %v91
    %vm112 = vcmp.eq.s32.totalorder %v85, %v88
    %vm113 = vcmp.eq.s32.totalorder %v85, %v89
    %vm114 = vcmp.eq.s32.totalorder %v85, %v90
    %vm115 = vcmp.eq.s32.totalorder %v85, %v91
    %vm116 = vcmp.eq.s32.totalorder %v86, %v88
    %vm117 = vcmp.eq.s32.totalorder %v86, %v89
    %vm118 = vcmp.eq.s32.totalorder %v86, %v90
    %vm119 = vcmp.eq.s32.totalorder %v86, %v91
    %vm120 = vcmp.eq.s32.totalorder %v87, %v88
    %vm121 = vcmp.eq.s32.totalorder %v87, %v89
    %vm122 = vcmp.eq.s32.totalorder %v87, %v90
    %vm123 = vcmp.eq.s32.totalorder %v87, %v91
    %v124 = vsel %vm92, 1, 0
    %v125 = vsel %vm93, 1, 0
    %v126 = vsel %vm94, 1, 0
    %v127 = vsel %vm95, 1, 0
    %v128 = vsel %vm96, 1, 0
    %v129 = vsel %vm97, 1, 0
    %v130 = vsel %vm98, 1, 0
    %v131 = vsel %vm99, 1, 0
    %v132 = vsel %vm100, 1, 0
    %v133 = vsel %vm101, 1, 0
    %v134 = vsel %vm102, 1, 0
    %v135 = vsel %vm103, 1, 0
    %v136 = vsel %vm104, 1, 0
    %v137 = vsel %vm105, 1, 0
    %v138 = vsel %vm106, 1, 0
    %v139 = vsel %vm107, 1, 0
    %v140 = vsel %vm108, 1, 0
    %v141 = vsel %vm109, 1, 0
    %v142 = vsel %vm110, 1, 0
    %v143 = vsel %vm111, 1, 0
    %v144 = vsel %vm112, 1, 0
    %v145 = vsel %vm113, 1, 0
    %v146 = vsel %vm114, 1, 0
    %v147 = vsel %vm115, 1, 0
    %v148 = vsel %vm116, 1, 0
    %v149 = vsel %vm117, 1, 0
    %v150 = vsel %vm118, 1, 0
    %v151 = vsel %vm119, 1, 0
    %v152 = vsel %vm120, 1, 0
    %v153 = vsel %vm121, 1, 0
    %v154 = vsel %vm122, 1, 0
    %v155 = vsel %vm123, 1, 0
    %v156 = vcvt.s32.f32 %v124
    %v157 = vcvt.s32.f32 %v125
    %v158 = vcvt.s32.f32 %v126
    %v159 = vcvt.s32.f32 %v127
    %v160 = vcvt.s32.f32 %v128
    %v161 = vcvt.s32.f32 %v129
    %v162 = vcvt.s32.f32 %v130
    %v163 = vcvt.s32.f32 %v131
    %v164 = vcvt.s32.f32 %v132
    %v165 = vcvt.s32.f32 %v133
    %v166 = vcvt.s32.f32 %v134
    %v167 = vcvt.s32.f32 %v135
    %v168 = vcvt.s32.f32 %v136
    %v169 = vcvt.s32.f32 %v137
    %v170 = vcvt.s32.f32 %v138
    %v171 = vcvt.s32.f32 %v139
    %v172 = vcvt.s32.f32 %v140
    %v173 = vcvt.s32.f32 %v141
    %v174 = vcvt.s32.f32 %v142
    %v175 = vcvt.s32.f32 %v143
    %v176 = vcvt.s32.f32 %v144
    %v177 = vcvt.s32.f32 %v145
    %v178 = vcvt.s32.f32 %v146
    %v179 = vcvt.s32.f32 %v147
    %v180 = vcvt.s32.f32 %v148
    %v181 = vcvt.s32.f32 %v149
    %v182 = vcvt.s32.f32 %v150
    %v183 = vcvt.s32.f32 %v151
    %v184 = vcvt.s32.f32 %v152
    %v185 = vcvt.s32.f32 %v153
    %v186 = vcvt.s32.f32 %v154
    %v187 = vcvt.s32.f32 %v155
    %v188 = vadd.s32 %v80, 64
    %v189 = vadd.s32 %v80, 72
    %v190 = vadd.s32 %v80, 80
    %v191 = vadd.s32 %v80, 88
    %v192 = vadd.s32 %v80, 96
    %v193 = vadd.s32 %v80, 104
    %v194 = vadd.s32 %v80, 112
    %v195 = vadd.s32 %v80, 120
    %v196 = vperm.slane %v78, 0
    %v197 = vperm.slane %v78, 1
    %v198 = vperm.slane %v78, 2
    %v199 = vperm.slane %v78, 3
    %vm200 = vcmp.eq.s32.totalorder %v80, %v196
    %vm201 = vcmp.eq.s32.totalorder %v80, %v197
    %vm202 = vcmp.eq.s32.totalorder %v80, %v198
    %vm203 = vcmp.eq.s32.totalorder %v80, %v199
    %vm204 = vcmp.eq.s32.totalorder %v81, %v196
    %vm205 = vcmp.eq.s32.totalorder %v81, %v197
    %vm206 = vcmp.eq.s32.totalorder %v81, %v198
    %vm207 = vcmp.eq.s32.totalorder %v81, %v199
    %vm208 = vcmp.eq.s32.totalorder %v82, %v196
    %vm209 = vcmp.eq.s32.totalorder %v82, %v197
    %vm210 = vcmp.eq.s32.totalorder %v82, %v198
    %vm211 = vcmp.eq.s32.totalorder %v82, %v199
    %vm212 = vcmp.eq.s32.totalorder %v83, %v196
    %vm213 = vcmp.eq.s32.totalorder %v83, %v197
    %vm214 = vcmp.eq.s32.totalorder %v83, %v198
    %vm215 = vcmp.eq.s32.totalorder %v83, %v199
    %vm216 = vcmp.eq.s32.totalorder %v84, %v196
    %vm217 = vcmp.eq.s32.totalorder %v84, %v197
    %vm218 = vcmp.eq.s32.totalorder %v84, %v198
    %vm219 = vcmp.eq.s32.totalorder %v84, %v199
    %vm220 = vcmp.eq.s32.totalorder %v85, %v196
    %vm221 = vcmp.eq.s32.totalorder %v85, %v197
    %vm222 = vcmp.eq.s32.totalorder %v85, %v198
    %vm223 = vcmp.eq.s32.totalorder %v85, %v199
    %vm224 = vcmp.eq.s32.totalorder %v86, %v196
    %vm225 = vcmp.eq.s32.totalorder %v86, %v197
    %vm226 = vcmp.eq.s32.totalorder %v86, %v198
    %vm227 = vcmp.eq.s32.totalorder %v86, %v199
    %vm228 = vcmp.eq.s32.totalorder %v87, %v196
    %vm229 = vcmp.eq.s32.totalorder %v87, %v197
    %vm230 = vcmp.eq.s32.totalorder %v87, %v198
    %vm231 = vcmp.eq.s32.totalorder %v87, %v199
    %vm232 = vcmp.eq.s32.totalorder %v188, %v196
    %vm233 = vcmp.eq.s32.totalorder %v188, %v197
    %vm234 = vcmp.eq.s32.totalorder %v188, %v198
    %vm235 = vcmp.eq.s32.totalorder %v188, %v199
    %vm236 = vcmp.eq.s32.totalorder %v189, %v196
    %vm237 = vcmp.eq.s32.totalorder %v189, %v197
    %vm238 = vcmp.eq.s32.totalorder %v189, %v198
    %vm239 = vcmp.eq.s32.totalorder %v189, %v199
    %vm240 = vcmp.eq.s32.totalorder %v190, %v196
    %vm241 = vcmp.eq.s32.totalorder %v190, %v197
    %vm242 = vcmp.eq.s32.totalorder %v190, %v198
    %vm243 = vcmp.eq.s32.totalorder %v190, %v199
    %vm244 = vcmp.eq.s32.totalorder %v191, %v196
    %vm245 = vcmp.eq.s32.totalorder %v191, %v197
    %vm246 = vcmp.eq.s32.totalorder %v191, %v198
    %vm247 = vcmp.eq.s32.totalorder %v191, %v199
    %vm248 = vcmp.eq.s32.totalorder %v192, %v196
    %vm249 = vcmp.eq.s32.totalorder %v192, %v197
    %vm250 = vcmp.eq.s32.totalorder %v192, %v198
    %vm251 = vcmp.eq.s32.totalorder %v192, %v199
    %vm252 = vcmp.eq.s32.totalorder %v193, %v196
    %vm253 = vcmp.eq.s32.totalorder %v193, %v197
    %vm254 = vcmp.eq.s32.totalorder %v193, %v198
    %vm255 = vcmp.eq.s32.totalorder %v193, %v199
    %vm256 = vcmp.eq.s32.totalorder %v194, %v196
    %vm257 = vcmp.eq.s32.totalorder %v194, %v197
    %vm258 = vcmp.eq.s32.totalorder %v194, %v198
    %vm259 = vcmp.eq.s32.totalorder %v194, %v199
    %vm260 = vcmp.eq.s32.totalorder %v195, %v196
    %vm261 = vcmp.eq.s32.totalorder %v195, %v197
    %vm262 = vcmp.eq.s32.totalorder %v195, %v198
    %vm263 = vcmp.eq.s32.totalorder %v195, %v199
    %v264 = vsel %vm200, 1, 0
    %v265 = vsel %vm201, 1, 0
    %v266 = vsel %vm202, 1, 0
    %v267 = vsel %vm203, 1, 0
    %v268 = vsel %vm204, 1, 0
    %v269 = vsel %vm205, 1, 0
    %v270 = vsel %vm206, 1, 0
    %v271 = vsel %vm207, 1, 0
    %v272 = vsel %vm208, 1, 0
    %v273 = vsel %vm209, 1, 0
    %v274 = vsel %vm210, 1, 0
    %v275 = vsel %vm211, 1, 0
    %v276 = vsel %vm212, 1, 0
    %v277 = vsel %vm213, 1, 0
    %v278 = vsel %vm214, 1, 0
    %v279 = vsel %vm215, 1, 0
    %v280 = vsel %vm216, 1, 0
    %v281 = vsel %vm217, 1, 0
    %v282 = vsel %vm218, 1, 0
    %v283 = vsel %vm219, 1, 0
    %v284 = vsel %vm220, 1, 0
    %v285 = vsel %vm221, 1, 0
    %v286 = vsel %vm222, 1, 0
    %v287 = vsel %vm223, 1, 0
    %v288 = vsel %vm224, 1, 0
    %v289 = vsel %vm225, 1, 0
    %v290 = vsel %vm226, 1, 0
    %v291 = vsel %vm227, 1, 0
    %v292 = vsel %vm228, 1, 0
    %v293 = vsel %vm229, 1, 0
    %v294 = vsel %vm230, 1, 0
    %v295 = vsel %vm231, 1, 0
    %v296 = vsel %vm232, 1, 0
    %v297 = vsel %vm233, 1, 0
    %v298 = vsel %vm234, 1, 0
    %v299 = vsel %vm235, 1, 0
    %v300 = vsel %vm236, 1, 0
    %v301 = vsel %vm237, 1, 0
    %v302 = vsel %vm238, 1, 0
    %v303 = vsel %vm239, 1, 0
    %v304 = vsel %vm240, 1, 0
    %v305 = vsel %vm241, 1, 0
    %v306 = vsel %vm242, 1, 0
    %v307 = vsel %vm243, 1, 0
    %v308 = vsel %vm244, 1, 0
    %v309 = vsel %vm245, 1, 0
    %v310 = vsel %vm246, 1, 0
    %v311 = vsel %vm247, 1, 0
    %v312 = vsel %vm248, 1, 0
    %v313 = vsel %vm249, 1, 0
    %v314 = vsel %vm250, 1, 0
    %v315 = vsel %vm251, 1, 0
    %v316 = vsel %vm252, 1, 0
    %v317 = vsel %vm253, 1, 0
    %v318 = vsel %vm254, 1, 0
    %v319 = vsel %vm255, 1, 0
    %v320 = vsel %vm256, 1, 0
    %v321 = vsel %vm257, 1, 0
    %v322 = vsel %vm258, 1, 0
    %v323 = vsel %vm259, 1, 0
    %v324 = vsel %vm260, 1, 0
    %v325 = vsel %vm261, 1, 0
    %v326 = vsel %vm262, 1, 0
    %v327 = vsel %vm263, 1, 0
    %v328 = vcvt.s32.f32 %v264
    %v329 = vcvt.s32.f32 %v265
    %v330 = vcvt.s32.f32 %v266
    %v331 = vcvt.s32.f32 %v267
    %v332 = vcvt.s32.f32 %v268
    %v333 = vcvt.s32.f32 %v269
    %v334 = vcvt.s32.f32 %v270
    %v335 = vcvt.s32.f32 %v271
    %v336 = vcvt.s32.f32 %v272
    %v337 = vcvt.s32.f32 %v273
    %v338 = vcvt.s32.f32 %v274
    %v339 = vcvt.s32.f32 %v275
    %v340 = vcvt.s32.f32 %v276
    %v341 = vcvt.s32.f32 %v277
    %v342 = vcvt.s32.f32 %v278
    %v343 = vcvt.s32.f32 %v279
    %v344 = vcvt.s32.f32 %v280
    %v345 = vcvt.s32.f32 %v281
    %v346 = vcvt.s32.f32 %v282
    %v347 = vcvt.s32.f32 %v283
    %v348 = vcvt.s32.f32 %v284
    %v349 = vcvt.s32.f32 %v285
    %v350 = vcvt.s32.f32 %v286
    %v351 = vcvt.s32.f32 %v287
    %v352 = vcvt.s32.f32 %v288
    %v353 = vcvt.s32.f32 %v289
    %v354 = vcvt.s32.f32 %v290
    %v355 = vcvt.s32.f32 %v291
    %v356 = vcvt.s32.f32 %v292
    %v357 = vcvt.s32.f32 %v293
    %v358 = vcvt.s32.f32 %v294
    %v359 = vcvt.s32.f32 %v295
    %v360 = vcvt.s32.f32 %v296
    %v361 = vcvt.s32.f32 %v297
    %v362 = vcvt.s32.f32 %v298
    %v363 = vcvt.s32.f32 %v299
    %v364 = vcvt.s32.f32 %v300
    %v365 = vcvt.s32.f32 %v301
    %v366 = vcvt.s32.f32 %v302
    %v367 = vcvt.s32.f32 %v303
    %v368 = vcvt.s32.f32 %v304
    %v369 = vcvt.s32.f32 %v305
    %v370 = vcvt.s32.f32 %v306
    %v371 = vcvt.s32.f32 %v307
    %v372 = vcvt.s32.f32 %v308
    %v373 = vcvt.s32.f32 %v309
    %v374 = vcvt.s32.f32 %v310
    %v375 = vcvt.s32.f32 %v311
    %v376 = vcvt.s32.f32 %v312
    %v377 = vcvt.s32.f32 %v313
    %v378 = vcvt.s32.f32 %v314
    %v379 = vcvt.s32.f32 %v315
    %v380 = vcvt.s32.f32 %v316
    %v381 = vcvt.s32.f32 %v317
    %v382 = vcvt.s32.f32 %v318
    %v383 = vcvt.s32.f32 %v319
    %v384 = vcvt.s32.f32 %v320
    %v385 = vcvt.s32.f32 %v321
    %v386 = vcvt.s32.f32 %v322
    %v387 = vcvt.s32.f32 %v323
    %v388 = vcvt.s32.f32 %v324
    %v389 = vcvt.s32.f32 %v325
    %v390 = vcvt.s32.f32 %v326
    %v391 = vcvt.s32.f32 %v327
    %v392 = vld [vmem:[#allocation7] sm:$0xff]
    %v393 = vld [vmem:[#allocation7 + $0x8] sm:$0xff]
    %v394 = vld [vmem:[#allocation7 + $0x10] sm:$0xff]
    %v395 = vld [vmem:[#allocation7 + $0x18] sm:$0xff]
    %v396 = vld [vmem:[#allocation7 + $0x20] sm:$0x3]
    %vm397 = vcmask 523264
    %v399 = vsel %vm397, %v392, 0
    %v402 = vsel %vm397, %v393, 0
    %v405 = vsel %vm397, %v394, 0
    %v408 = vsel %vm397, %v395, 0
    %v411 = vsel %vm397, %v396, 0
    %413 = vmatpush.msra.mxu0 0.0
    %414 = vmatpush.msra.mxu0 0.0
    %415 = vmatpush.msra.mxu0 0.0
    %416 = vmatpush.msra.mxu0 0.0
    %417 = vmatpush.msra.mxu0 0.0
    %418 = vmatpush.msra.mxu0 0.0
    %419 = vmatpush.msra.mxu0 0.0
    %420 = vmatpush.msra.mxu0 0.0
    %421 = vmatpush.msra.mxu0 %v184
    %422 = vmatpush.msra.mxu0 %v180
    %423 = vmatpush.msra.mxu0 %v176
    %424 = vmatpush.msra.mxu0 %v172
    %425 = vmatpush.msra.mxu0 %v168
    %426 = vmatpush.msra.mxu0 %v164
    %427 = vmatpush.msra.mxu0 %v160
    %428 = vmatpush.msra.mxu0 %v156
    %429 = vmatmul.f32.gmra.mxu0 %v399
    %v430 = vpop.f32.mrf.mxu0
    %v431 = vadd.f32 0.0, %v430
    %432 = vmatmul.f32.gmra.mxu0 %v402
    %v433 = vpop.f32.mrf.mxu0
    %v434 = vadd.f32 0.0, %v433
    %435 = vmatmul.f32.gmra.mxu0 %v405
    %v436 = vpop.f32.mrf.mxu0
    %v437 = vadd.f32 0.0, %v436
    %438 = vmatmul.f32.gmra.mxu0 %v408
    %v439 = vpop.f32.mrf.mxu0
    %v440 = vadd.f32 0.0, %v439
    %441 = vmatmul.f32.gmra.mxu0 %v411
    %v442 = vpop.f32.mrf.mxu0
    %v443 = vadd.f32 0.0, %v442
    %444 = vdwg.mxu0
    %445 = vmatpush.msra.mxu0 0.0
    %446 = vmatpush.msra.mxu0 0.0
    %447 = vmatpush.msra.mxu0 0.0
    %448 = vmatpush.msra.mxu0 0.0
    %449 = vmatpush.msra.mxu0 0.0
    %450 = vmatpush.msra.mxu0 0.0
    %451 = vmatpush.msra.mxu0 0.0
    %452 = vmatpush.msra.mxu0 0.0
    %453 = vmatpush.msra.mxu0 %v185
    %454 = vmatpush.msra.mxu0 %v181
    %455 = vmatpush.msra.mxu0 %v177
    %456 = vmatpush.msra.mxu0 %v173
    %457 = vmatpush.msra.mxu0 %v169
    %458 = vmatpush.msra.mxu0 %v165
    %459 = vmatpush.msra.mxu0 %v161
    %460 = vmatpush.msra.mxu0 %v157
    %461 = vmatmul.f32.gmra.mxu0 %v399
    %v462 = vpop.f32.mrf.mxu0
    %v463 = vadd.f32 0.0, %v462
    %464 = vmatmul.f32.gmra.mxu0 %v402
    %v465 = vpop.f32.mrf.mxu0
    %v466 = vadd.f32 0.0, %v465
    %467 = vmatmul.f32.gmra.mxu0 %v405
    %v468 = vpop.f32.mrf.mxu0
    %v469 = vadd.f32 0.0, %v468
    %470 = vmatmul.f32.gmra.mxu0 %v408
    %v471 = vpop.f32.mrf.mxu0
    %v472 = vadd.f32 0.0, %v471
    %473 = vmatmul.f32.gmra.mxu0 %v411
    %v474 = vpop.f32.mrf.mxu0
    %v475 = vadd.f32 0.0, %v474
    %476 = vdwg.mxu0
    %477 = vmatpush.msra.mxu0 0.0
    %478 = vmatpush.msra.mxu0 0.0
    %479 = vmatpush.msra.mxu0 0.0
    %480 = vmatpush.msra.mxu0 0.0
    %481 = vmatpush.msra.mxu0 0.0
    %482 = vmatpush.msra.mxu0 0.0
    %483 = vmatpush.msra.mxu0 0.0
    %484 = vmatpush.msra.mxu0 0.0
    %485 = vmatpush.msra.mxu0 %v186
    %486 = vmatpush.msra.mxu0 %v182
    %487 = vmatpush.msra.mxu0 %v178
    %488 = vmatpush.msra.mxu0 %v174
    %489 = vmatpush.msra.mxu0 %v170
    %490 = vmatpush.msra.mxu0 %v166
    %491 = vmatpush.msra.mxu0 %v162
    %492 = vmatpush.msra.mxu0 %v158
    %493 = vmatmul.f32.gmra.mxu0 %v399
    %v494 = vpop.f32.mrf.mxu0
    %v495 = vadd.f32 0.0, %v494
    %496 = vmatmul.f32.gmra.mxu0 %v402
    %v497 = vpop.f32.mrf.mxu0
    %v498 = vadd.f32 0.0, %v497
    %499 = vmatmul.f32.gmra.mxu0 %v405
    %v500 = vpop.f32.mrf.mxu0
    %v501 = vadd.f32 0.0, %v500
    %502 = vmatmul.f32.gmra.mxu0 %v408
    %v503 = vpop.f32.mrf.mxu0
    %v504 = vadd.f32 0.0, %v503
    %505 = vmatmul.f32.gmra.mxu0 %v411
    %v506 = vpop.f32.mrf.mxu0
    %v507 = vadd.f32 0.0, %v506
    %508 = vdwg.mxu0
    %509 = vmatpush.msra.mxu0 0.0
    %510 = vmatpush.msra.mxu0 0.0
    %511 = vmatpush.msra.mxu0 0.0
    %512 = vmatpush.msra.mxu0 0.0
    %513 = vmatpush.msra.mxu0 0.0
    %514 = vmatpush.msra.mxu0 0.0
    %515 = vmatpush.msra.mxu0 0.0
    %516 = vmatpush.msra.mxu0 0.0
    %517 = vmatpush.msra.mxu0 %v187
    %518 = vmatpush.msra.mxu0 %v183
    %519 = vmatpush.msra.mxu0 %v179
    %520 = vmatpush.msra.mxu0 %v175
    %521 = vmatpush.msra.mxu0 %v171
    %522 = vmatpush.msra.mxu0 %v167
    %523 = vmatpush.msra.mxu0 %v163
    %524 = vmatpush.msra.mxu0 %v159
    %525 = vmatmul.f32.gmra.mxu0 %v399
    %v526 = vpop.f32.mrf.mxu0
    %v527 = vadd.f32 0.0, %v526
    %528 = vmatmul.f32.gmra.mxu0 %v402
    %v529 = vpop.f32.mrf.mxu0
    %v530 = vadd.f32 0.0, %v529
    %531 = vmatmul.f32.gmra.mxu0 %v405
    %v532 = vpop.f32.mrf.mxu0
    %v533 = vadd.f32 0.0, %v532
    %534 = vmatmul.f32.gmra.mxu0 %v408
    %v535 = vpop.f32.mrf.mxu0
    %v536 = vadd.f32 0.0, %v535
    %537 = vmatmul.f32.gmra.mxu0 %v411
    %v538 = vpop.f32.mrf.mxu0
    %v539 = vadd.f32 0.0, %v538
    %540 = vdwg.mxu0
    %v541 = vld [vmem:[#allocation8] sm:$0xff]
    %v542 = vld [vmem:[#allocation8 + $0x8] sm:$0xff]
    %v543 = vld [vmem:[#allocation8 + $0x10] sm:$0xff]
    %v544 = vld [vmem:[#allocation8 + $0x18] sm:$0xff]
    %v545 = vld [vmem:[#allocation8 + $0x20] sm:$0x3]
    %546 = vmatpush.msra.mxu0 %v388
    %547 = vmatpush.msra.mxu0 %v384
    %548 = vmatpush.msra.mxu0 %v380
    %549 = vmatpush.msra.mxu0 %v376
    %550 = vmatpush.msra.mxu0 %v372
    %551 = vmatpush.msra.mxu0 %v368
    %552 = vmatpush.msra.mxu0 %v364
    %553 = vmatpush.msra.mxu0 %v360
    %554 = vmatpush.msra.mxu0 %v356
    %555 = vmatpush.msra.mxu0 %v352
    %556 = vmatpush.msra.mxu0 %v348
    %557 = vmatpush.msra.mxu0 %v344
    %558 = vmatpush.msra.mxu0 %v340
    %559 = vmatpush.msra.mxu0 %v336
    %560 = vmatpush.msra.mxu0 %v332
    %561 = vmatpush.msra.mxu0 %v328
    %562 = vmatmul.f32.gmra.mxu0 %v541
    %v563 = vpop.f32.mrf.mxu0
    %v564 = vadd.f32 0.0, %v563
    %565 = vmatmul.f32.gmra.mxu0 %v542
    %v566 = vpop.f32.mrf.mxu0
    %v567 = vadd.f32 0.0, %v566
    %568 = vmatmul.f32.gmra.mxu0 %v543
    %v569 = vpop.f32.mrf.mxu0
    %v570 = vadd.f32 0.0, %v569
    %571 = vmatmul.f32.gmra.mxu0 %v544
    %v572 = vpop.f32.mrf.mxu0
    %v573 = vadd.f32 0.0, %v572
    %574 = vmatmul.f32.gmra.mxu0 %v545
    %v575 = vpop.f32.mrf.mxu0
    %v576 = vadd.f32 0.0, %v575
    %577 = vdwg.mxu0
    %578 = vmatpush.msra.mxu0 %v389
    %579 = vmatpush.msra.mxu0 %v385
    %580 = vmatpush.msra.mxu0 %v381
    %581 = vmatpush.msra.mxu0 %v377
    %582 = vmatpush.msra.mxu0 %v373
    %583 = vmatpush.msra.mxu0 %v369
    %584 = vmatpush.msra.mxu0 %v365
    %585 = vmatpush.msra.mxu0 %v361
    %586 = vmatpush.msra.mxu0 %v357
    %587 = vmatpush.msra.mxu0 %v353
    %588 = vmatpush.msra.mxu0 %v349
    %589 = vmatpush.msra.mxu0 %v345
    %590 = vmatpush.msra.mxu0 %v341
    %591 = vmatpush.msra.mxu0 %v337
    %592 = vmatpush.msra.mxu0 %v333
    %593 = vmatpush.msra.mxu0 %v329
    %594 = vmatmul.f32.gmra.mxu0 %v541
    %v595 = vpop.f32.mrf.mxu0
    %v596 = vadd.f32 0.0, %v595
    %597 = vmatmul.f32.gmra.mxu0 %v542
    %v598 = vpop.f32.mrf.mxu0
    %v599 = vadd.f32 0.0, %v598
    %600 = vmatmul.f32.gmra.mxu0 %v543
    %v601 = vpop.f32.mrf.mxu0
    %v602 = vadd.f32 0.0, %v601
    %603 = vmatmul.f32.gmra.mxu0 %v544
    %v604 = vpop.f32.mrf.mxu0
    %v605 = vadd.f32 0.0, %v604
    %606 = vmatmul.f32.gmra.mxu0 %v545
    %v607 = vpop.f32.mrf.mxu0
    %v608 = vadd.f32 0.0, %v607
    %609 = vdwg.mxu0
    %610 = vmatpush.msra.mxu0 %v390
    %611 = vmatpush.msra.mxu0 %v386
    %612 = vmatpush.msra.mxu0 %v382
    %613 = vmatpush.msra.mxu0 %v378
    %614 = vmatpush.msra.mxu0 %v374
    %615 = vmatpush.msra.mxu0 %v370
    %616 = vmatpush.msra.mxu0 %v366
    %617 = vmatpush.msra.mxu0 %v362
    %618 = vmatpush.msra.mxu0 %v358
    %619 = vmatpush.msra.mxu0 %v354
    %620 = vmatpush.msra.mxu0 %v350
    %621 = vmatpush.msra.mxu0 %v346
    %622 = vmatpush.msra.mxu0 %v342
    %623 = vmatpush.msra.mxu0 %v338
    %624 = vmatpush.msra.mxu0 %v334
    %625 = vmatpush.msra.mxu0 %v330
    %626 = vmatmul.f32.gmra.mxu0 %v541
    %v627 = vpop.f32.mrf.mxu0
    %v628 = vadd.f32 0.0, %v627
    %629 = vmatmul.f32.gmra.mxu0 %v542
    %v630 = vpop.f32.mrf.mxu0
    %v631 = vadd.f32 0.0, %v630
    %632 = vmatmul.f32.gmra.mxu0 %v543
    %v633 = vpop.f32.mrf.mxu0
    %v634 = vadd.f32 0.0, %v633
    %635 = vmatmul.f32.gmra.mxu0 %v544
    %v636 = vpop.f32.mrf.mxu0
    %v637 = vadd.f32 0.0, %v636
    %638 = vmatmul.f32.gmra.mxu0 %v545
    %v639 = vpop.f32.mrf.mxu0
    %v640 = vadd.f32 0.0, %v639
    %641 = vdwg.mxu0
    %642 = vmatpush.msra.mxu0 %v391
    %643 = vmatpush.msra.mxu0 %v387
    %644 = vmatpush.msra.mxu0 %v383
    %645 = vmatpush.msra.mxu0 %v379
    %646 = vmatpush.msra.mxu0 %v375
    %647 = vmatpush.msra.mxu0 %v371
    %648 = vmatpush.msra.mxu0 %v367
    %649 = vmatpush.msra.mxu0 %v363
    %650 = vmatpush.msra.mxu0 %v359
    %651 = vmatpush.msra.mxu0 %v355
    %652 = vmatpush.msra.mxu0 %v351
    %653 = vmatpush.msra.mxu0 %v347
    %654 = vmatpush.msra.mxu0 %v343
    %655 = vmatpush.msra.mxu0 %v339
    %656 = vmatpush.msra.mxu0 %v335
    %657 = vmatpush.msra.mxu0 %v331
    %658 = vmatmul.f32.gmra.mxu0 %v541
    %v659 = vpop.f32.mrf.mxu0
    %v660 = vadd.f32 0.0, %v659
    %661 = vmatmul.f32.gmra.mxu0 %v542
    %v662 = vpop.f32.mrf.mxu0
    %v663 = vadd.f32 0.0, %v662
    %664 = vmatmul.f32.gmra.mxu0 %v543
    %v665 = vpop.f32.mrf.mxu0
    %v666 = vadd.f32 0.0, %v665
    %667 = vmatmul.f32.gmra.mxu0 %v544
    %v668 = vpop.f32.mrf.mxu0
    %v669 = vadd.f32 0.0, %v668
    %670 = vmatmul.f32.gmra.mxu0 %v545
    %v671 = vpop.f32.mrf.mxu0
    %v672 = vadd.f32 0.0, %v671
    %673 = vdwg.mxu0
    %v674 = vmul.f32 %v431, %v564
    %v675 = vmul.f32 %v463, %v596
    %v676 = vmul.f32 %v495, %v628
    %v677 = vmul.f32 %v527, %v660
    %v678 = vmul.f32 %v434, %v567
    %v679 = vmul.f32 %v466, %v599
    %v680 = vmul.f32 %v498, %v631
    %v681 = vmul.f32 %v530, %v663
    %v682 = vmul.f32 %v437, %v570
    %v683 = vmul.f32 %v469, %v602
    %v684 = vmul.f32 %v501, %v634
    %v685 = vmul.f32 %v533, %v666
    %v686 = vmul.f32 %v440, %v573
    %v687 = vmul.f32 %v472, %v605
    %v688 = vmul.f32 %v504, %v637
    %v689 = vmul.f32 %v536, %v669
    %v690 = vmul.f32 %v443, %v576
    %v691 = vmul.f32 %v475, %v608
    %v692 = vmul.f32 %v507, %v640
    %v693 = vmul.f32 %v539, %v672
    %vm694 = vcmask 277504
    %v696 = vsel %vm694, 1.0, 0
    %vm698 = vcmask 1041408
    %v700 = vsel %vm698, %v690, 0
    %v703 = vsel %vm698, %v691, 0
    %v706 = vsel %vm698, %v692, 0
    %v709 = vsel %vm698, %v693, 0
    %711 = vmatpush.msra.mxu0 0.0
    %712 = vmatpush.msra.mxu0 0.0
    %713 = vmatpush.msra.mxu0 0.0
    %714 = vmatpush.msra.mxu0 0.0
    %715 = vmatpush.msra.mxu0 0.0
    %716 = vmatpush.msra.mxu0 0.0
    %717 = vmatpush.msra.mxu0 0.0
    %718 = vmatpush.msra.mxu0 0.0
    %719 = vmatpush.msra.mxu0 0.0
    %720 = vmatpush.msra.mxu0 0.0
    %721 = vmatpush.msra.mxu0 0.0
    %722 = vmatpush.msra.mxu0 %v700
    %723 = vmatpush.msra.mxu0 %v686
    %724 = vmatpush.msra.mxu0 %v682
    %725 = vmatpush.msra.mxu0 %v678
    %726 = vmatpush.msra.mxu0 %v674
    %727 = vmatmul.f32.gmra.mxu0 %v696
    %v728 = vpop.f32.mrf.mxu0
    %v729 = vadd.f32 0.0, %v728
    %730 = vdwg.mxu0
    %731 = vmatpush.msra.mxu0 0.0
    %732 = vmatpush.msra.mxu0 0.0
    %733 = vmatpush.msra.mxu0 0.0
    %734 = vmatpush.msra.mxu0 0.0
    %735 = vmatpush.msra.mxu0 0.0
    %736 = vmatpush.msra.mxu0 0.0
    %737 = vmatpush.msra.mxu0 0.0
    %738 = vmatpush.msra.mxu0 0.0
    %739 = vmatpush.msra.mxu0 0.0
    %740 = vmatpush.msra.mxu0 0.0
    %741 = vmatpush.msra.mxu0 0.0
    %742 = vmatpush.msra.mxu0 %v703
    %743 = vmatpush.msra.mxu0 %v687
    %744 = vmatpush.msra.mxu0 %v683
    %745 = vmatpush.msra.mxu0 %v679
    %746 = vmatpush.msra.mxu0 %v675
    %747 = vmatmul.f32.gmra.mxu0 %v696
    %v748 = vpop.f32.mrf.mxu0
    %v749 = vadd.f32 0.0, %v748
    %750 = vdwg.mxu0
    %751 = vmatpush.msra.mxu0 0.0
    %752 = vmatpush.msra.mxu0 0.0
    %753 = vmatpush.msra.mxu0 0.0
    %754 = vmatpush.msra.mxu0 0.0
    %755 = vmatpush.msra.mxu0 0.0
    %756 = vmatpush.msra.mxu0 0.0
    %757 = vmatpush.msra.mxu0 0.0
    %758 = vmatpush.msra.mxu0 0.0
    %759 = vmatpush.msra.mxu0 0.0
    %760 = vmatpush.msra.mxu0 0.0
    %761 = vmatpush.msra.mxu0 0.0
    %762 = vmatpush.msra.mxu0 %v706
    %763 = vmatpush.msra.mxu0 %v688
    %764 = vmatpush.msra.mxu0 %v684
    %765 = vmatpush.msra.mxu0 %v680
    %766 = vmatpush.msra.mxu0 %v676
    %767 = vmatmul.f32.gmra.mxu0 %v696
    %v768 = vpop.f32.mrf.mxu0
    %v769 = vadd.f32 0.0, %v768
    %770 = vdwg.mxu0
    %771 = vmatpush.msra.mxu0 0.0
    %772 = vmatpush.msra.mxu0 0.0
    %773 = vmatpush.msra.mxu0 0.0
    %774 = vmatpush.msra.mxu0 0.0
    %775 = vmatpush.msra.mxu0 0.0
    %776 = vmatpush.msra.mxu0 0.0
    %777 = vmatpush.msra.mxu0 0.0
    %778 = vmatpush.msra.mxu0 0.0
    %779 = vmatpush.msra.mxu0 0.0
    %780 = vmatpush.msra.mxu0 0.0
    %781 = vmatpush.msra.mxu0 0.0
    %782 = vmatpush.msra.mxu0 %v709
    %783 = vmatpush.msra.mxu0 %v689
    %784 = vmatpush.msra.mxu0 %v685
    %785 = vmatpush.msra.mxu0 %v681
    %786 = vmatpush.msra.mxu0 %v677
    %787 = vmatmul.f32.gmra.mxu0 %v696
    %v788 = vpop.f32.mrf.mxu0
    %v789 = vadd.f32 0.0, %v788
    %790 = vdwg.mxu0
    %v795 = vrot.slane %v749, 7
    %v796 = vrot.slane %v769, 6
    %v797 = vrot.slane %v789, 5
    %vm798 = vcmask 1040384
    %v799 = vsel %vm798, %v729, %v795
    %vm800 = vcmask 1042434
    %v801 = vsel %vm800, %v796, %v797
    %v802 = vsel %vm698, %v799, %v801
    %v804 = vlaneseq
    %vm805 = vcmp.ge.s32.totalorder %v804, 0
    %vm806 = vcmp.lt.s32.totalorder %v804, 512
    %vm807 = vmand %vm805, %vm806
    %808 = vst.msk [vmem:[#allocation10] sm:$0xf] %vm807, %v802
    // Predicated region
    $region34: #{tpu_custom_call.1} parent=1 // pred_check
      _
    $region35: #{tpu_custom_call.1} parent=1 // pred_check_branch
      %810 = sbr.rel (0) target = $region37
    $region36: #{tpu_custom_call.1} parent=1 // pred_region
      %812 = vsyncadd [#allocation4], 0
      %s814 = sshll.u32 [#allocation10], 4
      %s815 = int_to_ptr.vmem [resolvable:$true] %s814
      %s816 = sshll.u32 %s4, 4
      %s817 = int_to_ptr.hbm [resolvable:$true] %s816
      %819 = dma.vmem_to_hbm [thread:$0]  %s815, 64, %s817, [#allocation4]
    $region37: #{tpu_custom_call.1} parent=1 // pred_fallthru
      _
    // Predicated region
    $region38: #{tpu_custom_call.1} parent=1 // pred_check
      _
    $region39: #{tpu_custom_call.1} parent=1 // pred_check_branch
      %821 = sbr.rel (0) target = $region41
    $region40: #{tpu_custom_call.1} parent=1 // pred_region
      %823 = dma.done [#allocation4], 64
    $region41: #{tpu_custom_call.1} parent=1 // pred_fallthru
      _
    %824 = vsyncpa [#allocation3], 1
    %825 = vsyncpa [#allocation6], 1
    %826 = vsyncpa [#allocation9], 1
    %827 = vsyncpa [#allocation4], 1

</llo_original>
